<compile_context>
chip_gen: v5e
topology: v5e:2x2
jax: 0.10.0
libtpu: 0.0.40
codegen_flags: <defaults>
</compile_context>

<pallas_src>
import functools

import jax
import jax.numpy as jnp
from jax.experimental import pallas as pl
from jax.experimental.pallas import tpu as pltpu


def identity(x):
    """Identity forward pass: y = x.

    Matches PyTorch nn.Identity exactly (returns the same array, no copy, no
    kernel launch).  Inside jit this is a no-op; XLA sees straight through it.
    """
    return x


def _identity_copy_kernel(x_hbm, o_hbm, sems, *, chunks):
    """Pure-DMA HBM -> HBM copy.

    `chunks` is a static Python list of (start, size) slices along the leading
    dimension (or None for a single whole-array copy).  All chunk DMAs are
    started before any is waited on, so up to len(chunks) descriptors are in
    flight simultaneously.
    """
    if chunks is None:
        copies = [pltpu.make_async_copy(x_hbm, o_hbm, sems.at[0])]
    else:
        copies = [
            pltpu.make_async_copy(
                x_hbm.at[pl.ds(start, size)],
                o_hbm.at[pl.ds(start, size)],
                sems.at[i],
            )
            for i, (start, size) in enumerate(chunks)
        ]
    for cp in copies:   # issue all descriptors (multiple in flight)
        cp.start()
    for cp in copies:   # then block on completion
        cp.wait()


def identity_copy(x, *, max_chunks=None):
    """Identity that materializes a DISTINCT output buffer.

    Unlike `identity` (and unlike PyTorch nn.Identity, which aliases), this
    pays a full HBM read + write; it exists only for callers that explicitly
    need a fresh buffer.  Implemented as a few in-flight HBM->HBM DMAs with no
    VMEM staging and no grid overhead.
    """
    x = jnp.asarray(x)
    nbytes = x.size * x.dtype.itemsize

    if max_chunks is None:
        # Small arrays: one descriptor (per-descriptor overhead dominates).
        # Medium: 2 in-flight copies. Large: 4 (enough to saturate HBM on
        # v5e/v6e; still beneficial and safe on v7x).
        if nbytes < (1 << 20):
            max_chunks = 1
        elif nbytes < (16 << 20):
            max_chunks = 2
        else:
            max_chunks = 4

    if x.ndim == 0 or x.shape[0] <= 1 or max_chunks <= 1:
        num_sems = 1
        chunks = None
    else:
        n = min(max_chunks, x.shape[0])
        base, rem = divmod(x.shape[0], n)
        chunks = []
        start = 0
        for i in range(n):
            size = base + (1 if i < rem else 0)
            chunks.append((start, size))
            start += size
        num_sems = n
        if n == 1:
            chunks = None

    kernel = functools.partial(_identity_copy_kernel, chunks=chunks)
    return pl.pallas_call(
        kernel,
        out_shape=jax.ShapeDtypeStruct(x.shape, x.dtype),
        in_specs=[pl.BlockSpec(memory_space=pl.ANY)],
        out_specs=pl.BlockSpec(memory_space=pl.ANY),
        scratch_shapes=[pltpu.SemaphoreType.DMA((num_sems,))],
    )(x)


if __name__ == "__main__":
    key = jax.random.PRNGKey(0)
    # Small NCHW input consistent with a VGG-style feature map.
    x = jax.random.normal(key, (2, 4, 16, 16), dtype=jnp.float32)

    # Primary path: true identity (same array, zero work).
    y = identity(x)
    jax.block_until_ready(y)
    assert y.shape == x.shape
    assert y.dtype == x.dtype
    assert y is x  # exact nn.Identity semantics: alias, not a copy
    assert bool(jnp.all(y == x))

    # Pallas kernel path: materialized copy via pure HBM->HBM DMA (small
    # array -> single-descriptor path).
    y2 = identity_copy(x)
    jax.block_until_ready(y2)
    assert y2.shape == x.shape
    assert y2.dtype == x.dtype
    assert bool(jnp.all(y2 == x))

    # Exercise the multi-chunk (2 in-flight DMAs) path on a 2 MiB array.
    x_big = jax.random.normal(jax.random.PRNGKey(1), (512, 1024), dtype=jnp.float32)
    y_big = identity_copy(x_big)
    jax.block_until_ready(y_big)
    assert y_big.shape == x_big.shape
    assert bool(jnp.all(y_big == x_big))

    print("KERNEL_OK")
</pallas_src>

<mosaic_0001>
module attributes {stable_mosaic.version = 11 : i64} {
  func.func @_identity_copy_kernel(%arg0: memref<2x4x16x16xf32, #tpu.memory_space<any>>, %arg1: memref<2x4x16x16xf32, #tpu.memory_space<any>>, %arg2: memref<1x!tpu.dma_semaphore, #tpu.memory_space<semaphore_mem>>) attributes {dimension_semantics = [], scalar_prefetch = 0 : i64, scratch_operands = 1 : i64, tpu.core_type = #tpu.core_type<tc>} {
    %c0_i32 = arith.constant 0 : i32
    %0 = tpu.memref_slice %arg2[%c0_i32] : memref<1x!tpu.dma_semaphore, #tpu.memory_space<semaphore_mem>> -> memref<1x!tpu.dma_semaphore, #tpu.memory_space<semaphore_mem>>
    %1 = tpu.memref_squeeze %0 : memref<1x!tpu.dma_semaphore, #tpu.memory_space<semaphore_mem>> -> memref<!tpu.dma_semaphore, #tpu.memory_space<semaphore_mem>>
    tpu.enqueue_dma source(%arg0 : memref<2x4x16x16xf32, #tpu.memory_space<any>>) target(%arg1 : memref<2x4x16x16xf32, #tpu.memory_space<any>>) target_semaphore(%1 : memref<!tpu.dma_semaphore, #tpu.memory_space<semaphore_mem>>)
    %c0_i32_0 = arith.constant 0 : i32
    %2 = tpu.memref_slice %arg2[%c0_i32_0] : memref<1x!tpu.dma_semaphore, #tpu.memory_space<semaphore_mem>> -> memref<1x!tpu.dma_semaphore, #tpu.memory_space<semaphore_mem>>
    %3 = tpu.memref_squeeze %2 : memref<1x!tpu.dma_semaphore, #tpu.memory_space<semaphore_mem>> -> memref<!tpu.dma_semaphore, #tpu.memory_space<semaphore_mem>>
    tpu.wait_dma2 semaphore(%3 : memref<!tpu.dma_semaphore, #tpu.memory_space<semaphore_mem>>) src(%arg0 : memref<2x4x16x16xf32, #tpu.memory_space<any>>) dst(%arg1 : memref<2x4x16x16xf32, #tpu.memory_space<any>>)
    return
  }
}

</mosaic_0001>

<llo_original>
// kernel: tpu_custom_call.1
$region0: #{tpu_custom_call.1}
  #allocation0 [shape = 'u32[]', space=smem, size = 0x4, offset = 0x4, fixed_abs, tag = 'smem constant byte address 0x4 - core index']
  #allocation1 [shape = 'u32[72,128]{1,0:T(1,128)}', space=vmem, size = 0x9000, scoped, tag = 'internal scratch']
  #allocation2 [shape = 's32[1]{0}', space=sflag, size = 0x4, scoped, tag = 'scratch operand']
  #allocation3 [shape = 's32[]', space=sflag, size = 0x4, offset = 0, fixed_abs, tag = 'sflag constant byte address 0x0 - dummy sync flag']
  #allocation4 [shape = 'u32[0]{0}', space=smem, size = 0, offset = 0, fixed_abs, tag = 'smem constant byte address 0x0 - null']
  %s0 = inlined_call_operand.hbm [shape: f32[2,4,16,16], index: 0, kind: input, shape index: {}]
  %s1 = inlined_call_operand.hbm [shape: f32[2,4,16,16], index: 1, kind: output, shape index: {}]
  %s2 = sld [smem:[#allocation0]]
  $region2: #{tpu_custom_call.1} parent=0
    _
  %s4 = ssub.s32 1, %s2
  %s5 = scalar_select 0, %s4, %s2
  %s7 = sshll.u32 1, 14
  %s8 = sxor.u32 4294967295, %s7
  %s10 = sshll.u32 %s0, 4
  %s11 = int_to_ptr.hbm [resolvable:$true] %s10
  %s12 = sshll.u32 %s1, 4
  %s13 = int_to_ptr.hbm [resolvable:$true] %s12
  %16 = dma.general %s11, 2048, %s13, [#allocation2], [#allocation3], [#allocation4], 0, 0
  %s17 = smul.u32 2, 4
  %s18 = smul.u32 %s17, 16
  %s19 = smul.u32 %s18, 1
  %s20 = sshll.u32 %s19, 4
  %21 = dma.done [#allocation2], %s20
  %22 = vsyncmov [#allocation2]
  %s23 = vpop.sfrf %22
  %p24 = scmp.eq.s32.totalorder %s23, 0
  %p25 = pneg %p24
  %27 = shalt.err (%p25)

</llo_original>
